<compile_context>
chip_gen: v6e
topology: v6e:2x2x1
jax: 0.10.0
libtpu: 0.0.40
codegen_flags: <defaults>
</compile_context>

<pallas_src>
import jax
import jax.numpy as jnp
from jax.experimental import pallas as pl
from jax.experimental.pallas import tpu as pltpu


def _round_up(x, m):
    return ((x + m - 1) // m) * m


def _make_kernel(tile_s, tile_h, seq_len, has_s_tail):
    def kernel(h_ref, m_ref, o_ref, acc_ref):
        # h_ref   : VMEM (1, tS, tH)      hidden tile (native dtype)
        # m_ref   : VMEM (1, tS, 1)  f32  mask * 1/clamp(count, 1e-9) tile
        # o_ref   : VMEM (1, 1, tH)  f32  pooled output tile (resident across k)
        # acc_ref : VMEM (8, tH)     f32  per-sublane partial sums
        k = pl.program_id(2)

        @pl.when(k == 0)
        def _init():
            acc_ref[...] = jnp.zeros_like(acc_ref)

        # VPU: masked products in f32 (bf16 hidden is upcast on the multiply).
        prod = h_ref[0].astype(jnp.float32) * m_ref[0]          # (tS, tH)

        if has_s_tail:
            # The last S tile extends past the true sequence length; the padded
            # rows of the hidden tile are undefined (0 * NaN = NaN), so zero the
            # products for out-of-range rows.
            row = jax.lax.broadcasted_iota(jnp.int32, (tile_s, 1), 0) + k * tile_s
            prod = jnp.where(row < seq_len, prod, 0.0)

        # Per-sublane-group partial sums: vreg-aligned VPU adds only, no per-tile
        # cross-sublane (XLU) reduction.
        acc_ref[...] += prod.reshape(tile_s // 8, 8, tile_h).sum(axis=0)

        @pl.when(k == pl.num_programs(2) - 1)
        def _finalize():
            # One cross-sublane fold per (batch row, H tile).
            o_ref[0] = acc_ref[...].sum(axis=0, keepdims=True).astype(o_ref.dtype)

    return kernel


def mean_pooling(last_hidden_state, attention_mask, *,
                 max_block_bytes=4 << 20, max_tile_h=2048):
    """last_hidden_state: [B, S, H] (f32 or bf16), attention_mask: [B, S] -> [B, H] f32."""
    B, S, H = last_hidden_state.shape
    itemsize = jnp.dtype(last_hidden_state.dtype).itemsize

    # Per-row 1 / clamp(#valid tokens, 1e-9) folded into the mask (tiny [B,S] f32 op;
    # keeps the mask/multiply in f32 so fractional masks also stay exact).
    mask_f32 = attention_mask.astype(jnp.float32)
    inv = 1.0 / jnp.maximum(jnp.sum(mask_f32, axis=1, keepdims=True), jnp.float32(1e-9))
    mask_scaled = (mask_f32 * inv)[..., None]                   # (B, S, 1) f32

    # ---- tile selection -------------------------------------------------------
    # H tile: full H (rounded to 128 lanes) whenever it fits; otherwise the largest
    # 128-multiple <= max_tile_h that divides the padded H.  Never pads hidden.
    H_pad = _round_up(H, 128)
    if H_pad <= max_tile_h:
        tH = H_pad
    else:
        tH = max_tile_h
        while H_pad % tH:
            tH -= 128

    # v7x has 2 TensorCores: make sure the "parallel" grid axes have >= 2 blocks.
    n_h = (H + tH - 1) // tH
    if B * n_h < 2 and tH > 128:
        tH = _round_up(tH // 2, 128)

    # S tile: size the hidden block to ~max_block_bytes so each grid step moves
    # multiple MiB (amortizes the ~0.35us per-step overhead); multiple of 16
    # sublanes, capped at the (8-aligned) sequence length.
    tS = (max_block_bytes // (tH * itemsize)) // 16 * 16
    tS = max(tS, 16)
    S_align = _round_up(S, 8)
    if tS >= S_align:
        tS = S_align                       # single reduction tile

    n_s = (S + tS - 1) // tS
    n_h = (H + tH - 1) // tH
    grid = (B, n_h, n_s)                   # reduction axis (S) innermost
    has_s_tail = (S % tS) != 0

    kernel = _make_kernel(tS, tH, S, has_s_tail)

    out = pl.pallas_call(
        kernel,
        out_shape=jax.ShapeDtypeStruct((B, 1, H), jnp.float32),
        grid_spec=pltpu.PrefetchScalarGridSpec(
            num_scalar_prefetch=0,
            grid=grid,
            in_specs=[
                pl.BlockSpec((1, tS, tH), lambda b, j, k: (b, k, j)),   # hidden
                pl.BlockSpec((1, tS, 1), lambda b, j, k: (b, k, 0)),    # scaled mask
            ],
            out_specs=pl.BlockSpec((1, 1, tH), lambda b, j, k: (b, 0, j)),
            scratch_shapes=[pltpu.VMEM((8, tH), jnp.float32)],
        ),
        compiler_params=pltpu.CompilerParams(
            dimension_semantics=("parallel", "parallel", "arbitrary")),
    )(last_hidden_state, mask_scaled)

    return out.reshape(B, H)


def _reference(last_hidden_state, attention_mask):
    m = attention_mask[..., None].astype(jnp.float32)
    s = (last_hidden_state.astype(jnp.float32) * m).sum(1)
    return s / jnp.maximum(m.sum(1), jnp.float32(1e-9))


if __name__ == "__main__":
    B, S, H = 2, 8, 32
    key = jax.random.PRNGKey(0)
    k_h, _ = jax.random.split(key)

    last_hidden_state = jax.random.normal(k_h, (B, S, H), dtype=jnp.float32)
    # Deterministic mask: first row fully valid, second row has 5 valid tokens.
    lengths = jnp.array([S, 5], dtype=jnp.int32)
    attention_mask = (jnp.arange(S)[None, :] < lengths[:, None]).astype(jnp.int32)

    # f32 path
    out = jax.block_until_ready(mean_pooling(last_hidden_state, attention_mask))
    ref = _reference(last_hidden_state, attention_mask)
    assert out.shape == (B, H)
    assert jnp.allclose(out, ref, atol=1e-5, rtol=1e-5)

    # bf16 path (native-dtype hidden, f32 accumulation / output)
    h_bf16 = last_hidden_state.astype(jnp.bfloat16)
    out_bf = jax.block_until_ready(mean_pooling(h_bf16, attention_mask))
    ref_bf = _reference(h_bf16, attention_mask)
    assert jnp.allclose(out_bf, ref_bf, atol=1e-3, rtol=1e-3)

    print("KERNEL_OK")
</pallas_src>

<mosaic_0001>
module attributes {stable_mosaic.version = 11 : i64} {
  func.func @kernel(%arg0: i32, %arg1: i32, %arg2: i32, %arg3: memref<1x8x128xf32, #tpu.memory_space<vmem>>, %arg4: memref<1x8x1xf32, #tpu.memory_space<vmem>>, %arg5: memref<1x1x128xf32, #tpu.memory_space<vmem>>, %arg6: memref<8x128xf32, #tpu.memory_space<vmem>>) attributes {dimension_semantics = [#tpu.dimension_semantics<parallel>, #tpu.dimension_semantics<parallel>, #tpu.dimension_semantics<arbitrary>], iteration_bounds = array<i64: 2, 1, 1>, scalar_prefetch = 0 : i64, scratch_operands = 1 : i64, tpu.core_type = #tpu.core_type<tc>, window_params = [{transform_indices = @transform_0, window_bounds = array<i64: 1, 8, 128>}, {transform_indices = @transform_1, window_bounds = array<i64: 1, 8, 1>}, {transform_indices = @transform_2, window_bounds = array<i64: 1, 1, 128>}]} {
    %c0_i32 = arith.constant 0 : i32
    %0 = arith.cmpi eq, %arg2, %c0_i32 : i32
    %1 = arith.extui %0 : i1 to i32
    %c0_i32_0 = arith.constant 0 : i32
    %2 = arith.cmpi ne, %1, %c0_i32_0 : i32
    scf.if %2 {
      %cst_12 = arith.constant 0.000000e+00 : f32
      %17 = vector.broadcast %cst_12 : f32 to vector<8x128xf32>
      %c0_13 = arith.constant 0 : index
      %c0_14 = arith.constant 0 : index
      %18 = vector.load %arg6[%c0_13, %c0_14] : memref<8x128xf32, #tpu.memory_space<vmem>>, vector<8x128xf32>
      tpu.vector_store %arg6[%c0_13, %c0_14], %17 {strides = array<i32>} : memref<8x128xf32, #tpu.memory_space<vmem>>, vector<8x128xf32>,
    } else {
    }
    %c0 = arith.constant 0 : index
    %c0_1 = arith.constant 0 : index
    %c0_2 = arith.constant 0 : index
    %3 = vector.load %arg3[%c0, %c0_1, %c0_2] : memref<1x8x128xf32, #tpu.memory_space<vmem>>, vector<1x8x128xf32>
    %4 = vector.shape_cast %3 : vector<1x8x128xf32> to vector<8x128xf32>
    %c0_3 = arith.constant 0 : index
    %c0_4 = arith.constant 0 : index
    %c0_5 = arith.constant 0 : index
    %5 = vector.load %arg4[%c0_3, %c0_4, %c0_5] : memref<1x8x1xf32, #tpu.memory_space<vmem>>, vector<1x8x1xf32>
    %6 = vector.shape_cast %5 : vector<1x8x1xf32> to vector<8x1xf32>
    %7 = vector.broadcast %6 : vector<8x1xf32> to vector<8x128xf32>
    %8 = arith.mulf %4, %7 : vector<8x128xf32>
    %c0_6 = arith.constant 0 : index
    %c0_7 = arith.constant 0 : index
    %9 = vector.load %arg6[%c0_6, %c0_7] : memref<8x128xf32, #tpu.memory_space<vmem>>, vector<8x128xf32>
    %10 = vector.shape_cast %8 : vector<8x128xf32> to vector<1x8x128xf32>
    %cst = arith.constant dense<0.000000e+00> : vector<8x128xf32>
    %11 = vector.multi_reduction <add>, %10, %cst [0] : vector<1x8x128xf32> to vector<8x128xf32>
    %12 = arith.addf %9, %11 : vector<8x128xf32>
    %c0_8 = arith.constant 0 : index
    %c0_9 = arith.constant 0 : index
    %13 = vector.load %arg6[%c0_8, %c0_9] : memref<8x128xf32, #tpu.memory_space<vmem>>, vector<8x128xf32>
    tpu.vector_store %arg6[%c0_8, %c0_9], %12 {strides = array<i32>} : memref<8x128xf32, #tpu.memory_space<vmem>>, vector<8x128xf32>,
    %c0_i32_10 = arith.constant 0 : i32
    %14 = arith.cmpi eq, %arg2, %c0_i32_10 : i32
    %15 = arith.extui %14 : i1 to i32
    %c0_i32_11 = arith.constant 0 : i32
    %16 = arith.cmpi ne, %15, %c0_i32_11 : i32
    scf.if %16 {
      %c0_12 = arith.constant 0 : index
      %c0_13 = arith.constant 0 : index
      %17 = vector.load %arg6[%c0_12, %c0_13] : memref<8x128xf32, #tpu.memory_space<vmem>>, vector<8x128xf32>
      %cst_14 = arith.constant dense<0.000000e+00> : vector<128xf32>
      %18 = vector.multi_reduction <add>, %17, %cst_14 [0] : vector<8x128xf32> to vector<128xf32>
      %19 = vector.shape_cast %18 : vector<128xf32> to vector<1x128xf32>
      %c0_15 = arith.constant 0 : index
      %c0_16 = arith.constant 0 : index
      %c0_17 = arith.constant 0 : index
      %20 = vector.load %arg5[%c0_15, %c0_16, %c0_17] : memref<1x1x128xf32, #tpu.memory_space<vmem>>, vector<1x1x128xf32>
      %21 = vector.shape_cast %20 : vector<1x1x128xf32> to vector<1x128xf32>
      %22 = vector.shape_cast %19 : vector<1x128xf32> to vector<1x1x128xf32>
      tpu.vector_store %arg5[%c0_15, %c0_16, %c0_17], %22 {strides = array<i32>} : memref<1x1x128xf32, #tpu.memory_space<vmem>>, vector<1x1x128xf32>,
    } else {
    }
    return
  }
  func.func @transform_0(%arg0: i32, %arg1: i32, %arg2: i32) -> (i32, i32, i32) {
    %c0_i32 = arith.constant 0 : i32
    return %arg0, %arg2, %arg1 : i32, i32, i32
  }
  func.func @transform_1(%arg0: i32, %arg1: i32, %arg2: i32) -> (i32, i32, i32) {
    %c0_i32 = arith.constant 0 : i32
    %c0_i32_0 = arith.constant 0 : i32
    return %arg0, %arg2, %c0_i32 : i32, i32, i32
  }
  func.func @transform_2(%arg0: i32, %arg1: i32, %arg2: i32) -> (i32, i32, i32) {
    %c0_i32 = arith.constant 0 : i32
    %c0_i32_0 = arith.constant 0 : i32
    return %arg0, %c0_i32, %arg1 : i32, i32, i32
  }
}

</mosaic_0001>

<llo_original>
// kernel: tpu_custom_call.1
$region0: #{tpu_custom_call.1}
  #allocation0 [shape = 'u32[]', space=smem, size = 0x4, offset = 0x4, fixed_abs, tag = 'smem constant byte address 0x4 - core index']
  #allocation1 [shape = 'u32[144,128]{1,0:T(1,128)}', space=vmem, size = 0x12000, scoped, tag = 'internal scratch']
  #allocation2 [shape = 'f32[8,128]{1,0:T(8,128)}', space=vmem, size = 0x1000, scoped, tag = 'scratch operand']
  %s0 = inlined_call_operand.vmem [shape: f32[2,8,32], index: 0, kind: input, shape index: {}]
  %s1 = inlined_call_operand.vmem [shape: f32[2,8,1], index: 1, kind: input, shape index: {}]
  %s2 = inlined_call_operand.hbm [shape: f32[2,1,32], index: 2, kind: output, shape index: {}]
  %s3 = sld [smem:[#allocation0]]
  $region49: #{tpu_custom_call.1} parent=0
    _
  %s5 = ssub.s32 1, %s3
  %s6 = scalar_select 0, %s5, %s3
  $region1: #{tpu_custom_call.1} parent=0
    #allocation3 [shape = 'u8[1024]{0}', space=vmem, size = 0x400, scoped, tag = 'output window, operand 0']
    #allocation4 [shape = 's32[2]{0}', space=sflag, size = 0x8, scoped, tag = 'scoped memory for tpu_custom_call.1']
    %7 = vsyncpa [#allocation4], 0
    %s8 = scalar_lea.sflag [#allocation4], 1
    %9 = vsyncpa %s8, 0
    loop: start=0, step=1, limit=4
    $region2: #{tpu_custom_call.1} parent=1 // loop_pre_header
      _
    $region3: #{tpu_custom_call.1} parent=1 // loop_header
      %s11 = sphi 0, %s15
      %p12 = scmp.ge.s32.totalorder %s11, 4
      %s18 = sphi 0, %s37
      %s19 = sphi 0, %s33
      %s20 = sphi 0, %s29
      %s21 = sphi 0, %s18
      %s22 = sphi 0, %s19
      %s23 = sphi 0, %s20
      %s24 = sphi 0, %s21
      %s25 = sphi 0, %s22
      %s26 = sphi 0, %s23
      %s44 = sphi 0, %s46
      %s47 = sphi 0, %s44
      %s48 = sphi 0, %s47
      %s64 = sphi 0, %s48
      %s72 = sphi 0, %s74
      %s75 = sphi 0, %s72
      %s76 = sphi 0, %s75
      %s92 = sphi 0, %s76
      %s100 = sphi 0, %s102
      %s103 = sphi 0, %s100
      %s104 = sphi 0, %s103
      %s120 = sphi 0, %s104
    $region4: #{tpu_custom_call.1} parent=1 // loop_header_branch
      %14 = sbr.rel (%p12) target = $region8
    $region5: #{tpu_custom_call.1} parent=1 // loop_body
      %s16 = ssub.s32 %s11, 1
      %s17 = ssub.s32 %s11, 2
      %s27 = sadd.s32 1, %s20
      %p28 = scmp.ge.s32.totalorder %s27, 1
      %s29 = scalar_select %p28, 0, %s27
      %s30 = sadd.s32 1, %s19
      %s31 = scalar_select %p28, %s30, %s19
      %p32 = scmp.ge.s32.totalorder %s31, 1
      %s33 = scalar_select %p32, 0, %s31
      %s34 = sadd.s32 1, %s18
      %s35 = scalar_select %p32, %s34, %s18
      %p36 = scmp.ge.s32.totalorder %s35, 2
      %s37 = scalar_select %p36, 0, %s35
      %s38 = ssub.s32 %s18, %s37
      %s39 = ssub.s32 %s20, %s29
      %s40 = sor.u32 %s38, %s39
      %s41 = ssub.s32 %s19, %s33
      %s42 = sor.u32 %s40, %s41
      %p43 = scmp.eq.s32.totalorder %s42, 0
      %s45 = sadd.s32 %s44, 1
      %s46 = scalar_select %p43, %s44, %s45
      %p49 = pneg %p43
      %p50 = scmp.eq.s32.totalorder %s11, 1
      %p51 = por %p49, %p50
      %p52 = scmp.ne.s32.totalorder %s44, %s47
      %p53 = scmp.eq.s32.totalorder %s11, 0
      %p54 = por %p52, %p53
      %p55 = scmp.ne.s32.totalorder %s44, %s47
      %p56 = scmp.eq.s32.totalorder %s16, 1
      %p57 = por %p55, %p56
      %p58 = scmp.ne.s32.totalorder %s47, %s48
      %p59 = scmp.eq.s32.totalorder %s16, 0
      %p60 = por %p58, %p59
      %p61 = scmp.ne.s32.totalorder %s47, %s48
      %p62 = scmp.eq.s32.totalorder %s17, 1
      %p63 = por %p61, %p62
      %p65 = scmp.ne.s32.totalorder %s48, %s64
      %p66 = scmp.eq.s32.totalorder %s17, 0
      %p67 = por %p65, %p66
      %s68 = ssub.s32 %s18, %s37
      %s69 = ssub.s32 %s20, %s29
      %s70 = sor.u32 %s68, %s69
      %p71 = scmp.eq.s32.totalorder %s70, 0
      %s73 = sadd.s32 %s72, 1
      %s74 = scalar_select %p71, %s72, %s73
      %p77 = pneg %p71
      %p78 = scmp.eq.s32.totalorder %s11, 1
      %p79 = por %p77, %p78
      %p80 = scmp.ne.s32.totalorder %s72, %s75
      %p81 = scmp.eq.s32.totalorder %s11, 0
      %p82 = por %p80, %p81
      %p83 = scmp.ne.s32.totalorder %s72, %s75
      %p84 = scmp.eq.s32.totalorder %s16, 1
      %p85 = por %p83, %p84
      %p86 = scmp.ne.s32.totalorder %s75, %s76
      %p87 = scmp.eq.s32.totalorder %s16, 0
      %p88 = por %p86, %p87
      %p89 = scmp.ne.s32.totalorder %s75, %s76
      %p90 = scmp.eq.s32.totalorder %s17, 1
      %p91 = por %p89, %p90
      %p93 = scmp.ne.s32.totalorder %s76, %s92
      %p94 = scmp.eq.s32.totalorder %s17, 0
      %p95 = por %p93, %p94
      %s96 = ssub.s32 %s18, %s37
      %s97 = ssub.s32 %s19, %s33
      %s98 = sor.u32 %s96, %s97
      %p99 = scmp.eq.s32.totalorder %s98, 0
      %s101 = sadd.s32 %s100, 1
      %s102 = scalar_select %p99, %s100, %s101
      %p105 = pneg %p99
      %p106 = scmp.eq.s32.totalorder %s11, 1
      %p107 = por %p105, %p106
      %p108 = scmp.ne.s32.totalorder %s100, %s103
      %p109 = scmp.eq.s32.totalorder %s11, 0
      %p110 = por %p108, %p109
      %p111 = scmp.ne.s32.totalorder %s100, %s103
      %p112 = scmp.eq.s32.totalorder %s16, 1
      %p113 = por %p111, %p112
      %p114 = scmp.ne.s32.totalorder %s103, %s104
      %p115 = scmp.eq.s32.totalorder %s16, 0
      %p116 = por %p114, %p115
      %p117 = scmp.ne.s32.totalorder %s103, %s104
      %p118 = scmp.eq.s32.totalorder %s17, 1
      %p119 = por %p117, %p118
      %p121 = scmp.ne.s32.totalorder %s104, %s120
      %p122 = scmp.eq.s32.totalorder %s17, 0
      %p123 = por %p121, %p122
      %p124 = scmp.le.s32.totalorder 1, %s11
      %p125 = scmp.lt.s32.totalorder %s11, 3
      %p126 = pnand %p124, %p125
      %p127 = pneg %p126
      // Predicated region
      $region9: #{tpu_custom_call.1} parent=5 // pred_check
        _
      $region10: #{tpu_custom_call.1} parent=5 // pred_check_branch
        %129 = sbr.rel (%p126) target = $region12
      $region11: #{tpu_custom_call.1} parent=5 // pred_region
        %s130 = ssub.s32 %s11, 1
      $region12: #{tpu_custom_call.1} parent=5 // pred_fallthru
        _
      %p131 = scmp.lt.s32.totalorder %s11, 2
      // Predicated region
      $region13: #{tpu_custom_call.1} parent=5 // pred_check
        %p132 = pneg %p131
      $region14: #{tpu_custom_call.1} parent=5 // pred_check_branch
        %134 = sbr.rel (%p132) target = $region16
      $region15: #{tpu_custom_call.1} parent=5 // pred_region
        // Predicated region
        $region17: #{tpu_custom_call.1} parent=15 // pred_check
          %p135 = pneg %p54
        $region18: #{tpu_custom_call.1} parent=15 // pred_check_branch
          %137 = sbr.rel (%p135) target = $region20
        $region19: #{tpu_custom_call.1} parent=15 // pred_region
          %p138 = scmp.lt.s32.totalorder %s18, 1
          %s139 = scalar_select %p138, %s18, 1
          %p140 = scmp.lt.s32.totalorder %s20, 0
          %s141 = scalar_select %p140, %s20, 0
          %p142 = scmp.lt.s32.totalorder %s19, 0
          %s143 = scalar_select %p142, %s19, 0
          %s144 = sadd.s32 %s143, %s141
          %s145 = sadd.s32 %s144, %s139
          %s146 = smul.addr %s145, 8
          %s147 = scalar_lea.vmem %s0, %s146
        $region20: #{tpu_custom_call.1} parent=15 // pred_fallthru
          _
        // Predicated region
        $region21: #{tpu_custom_call.1} parent=15 // pred_check
          %p148 = pneg %p82
        $region22: #{tpu_custom_call.1} parent=15 // pred_check_branch
          %150 = sbr.rel (%p148) target = $region24
        $region23: #{tpu_custom_call.1} parent=15 // pred_region
          %p151 = scmp.lt.s32.totalorder %s18, 1
          %s152 = scalar_select %p151, %s18, 1
          %p153 = scmp.lt.s32.totalorder %s20, 0
          %s154 = scalar_select %p153, %s20, 0
          %s155 = sadd.s32 %s154, %s152
          %s156 = smul.addr %s155, 8
          %s157 = scalar_lea.vmem %s1, %s156
        $region24: #{tpu_custom_call.1} parent=15 // pred_fallthru
          _
      $region16: #{tpu_custom_call.1} parent=5 // pred_fallthru
        _
      %p158 = scmp.le.s32.totalorder 1, %s11
      %p159 = scmp.lt.s32.totalorder %s11, 3
      %p160 = pnand %p158, %p159
      %p161 = pneg %p160
      // Predicated region
      $region25: #{tpu_custom_call.1} parent=5 // pred_check
        _
      $region26: #{tpu_custom_call.1} parent=5 // pred_check_branch
        %163 = sbr.rel (%p160) target = $region28
      $region27: #{tpu_custom_call.1} parent=5 // pred_region
        %s164 = ssub.s32 %s11, 1
        %p165 = scmp.lt.s32.totalorder %s21, 1
        %s166 = scalar_select %p165, %s21, 1
        %p167 = scmp.lt.s32.totalorder %s23, 0
        %s168 = scalar_select %p167, %s23, 0
        %p169 = scmp.lt.s32.totalorder %s22, 0
        %s170 = scalar_select %p169, %s22, 0
        %s171 = sadd.s32 %s170, %s168
        %s172 = sadd.s32 %s171, %s166
        %s173 = smul.addr %s172, 8
        %s174 = scalar_lea.vmem %s0, %s173
        %p175 = pneg %p60
        %p176 = pneg %p57
        %p177 = scmp.lt.s32.totalorder %s21, 1
        %s178 = scalar_select %p177, %s21, 1
        %p179 = scmp.lt.s32.totalorder %s23, 0
        %s180 = scalar_select %p179, %s23, 0
        %s181 = sadd.s32 %s180, %s178
        %s182 = smul.addr %s181, 8
        %s183 = scalar_lea.vmem %s1, %s182
        %p184 = pneg %p88
        %p185 = pneg %p85
        %p186 = pneg %p116
        %p187 = pneg %p113
        %s188 = sand.u32 %s103, 1
        %s189 = scalar_lea.sflag [#allocation4], %s188
        %s190 = sand.u32 %s103, 1
        %s191 = scalar_lea.vmem [#allocation3], %s190
        %p192 = scmp.lt.s32.totalorder %s21, 1
        %s193 = scalar_select %p192, %s21, 1
        %p194 = scmp.lt.s32.totalorder %s23, 0
        %s195 = scalar_select %p194, %s23, 0
        %p196 = scmp.lt.s32.totalorder %s22, 0
        %s197 = scalar_select %p196, %s22, 0
        %s198 = sadd.s32 %s197, %s195
        %s199 = sadd.s32 %s198, %s193
        %s200 = smul.addr %s199, 8
        %s201 = scalar_lea.vmem %s0, %s200
        %p202 = scmp.lt.s32.totalorder %s21, 1
        %s203 = scalar_select %p202, %s21, 1
        %p204 = scmp.lt.s32.totalorder %s23, 0
        %s205 = scalar_select %p204, %s23, 0
        %s206 = sadd.s32 %s205, %s203
        %s207 = smul.addr %s206, 8
        %s208 = scalar_lea.vmem %s1, %s207
        %p209 = scmp.eq.s32.totalorder %s23, 0
        // Predicated region
        $region29: #{tpu_custom_call.1} parent=27 // pred_check
          %p210 = pneg %p209
        $region30: #{tpu_custom_call.1} parent=27 // pred_check_branch
          %212 = sbr.rel (%p210) target = $region32
        $region31: #{tpu_custom_call.1} parent=27 // pred_region
          %213 = vst [vmem:[#allocation2] sm:$0xff] 0.0
        $region32: #{tpu_custom_call.1} parent=27 // pred_fallthru
          _
        %v214 = vld [vmem:[%s201] sm:$0xff]
        %v215 = vld [vmem:[%s208] sm:$0xff]
        %217 = vset.pattern.permute.xlu0 0
        %218 = vperm.xlu0 %217, %v215
        %v219 = vpop.permute.xlu0 %218
        %v221 = vmul.f32 %v214, %v219
        %v222 = vld [vmem:[#allocation2] sm:$0xff]
        %v223 = vadd.f32 %v221, 0.0
        %v224 = vadd.f32 %v222, %v223
        %225 = vst [vmem:[#allocation2] sm:$0xff] %v224
        // Predicated region
        $region33: #{tpu_custom_call.1} parent=27 // pred_check
          %p226 = pneg %p209
        $region34: #{tpu_custom_call.1} parent=27 // pred_check_branch
          %228 = sbr.rel (%p226) target = $region36
        $region35: #{tpu_custom_call.1} parent=27 // pred_region
          %v229 = vld [vmem:[#allocation2] sm:$0xff]
          %v230 = vrot.slane %v229, 4
          %v231 = vadd.f32 %v229, %v230
          %v232 = vrot.slane %v231, 2
          %v233 = vadd.f32 %v231, %v232
          %v234 = vrot.slane %v233, 1
          %v235 = vadd.f32 %v233, %v234
          %236 = vst [vmem:[%s191] sm:$0x1] %v235
        $region36: #{tpu_custom_call.1} parent=27 // pred_fallthru
          _
        %s237 = sand.u32 %s103, 1
        %s238 = scalar_lea.sflag [#allocation4], %s237
        %s239 = sand.u32 %s103, 1
        %s240 = scalar_lea.vmem [#allocation3], %s239
        // Predicated region
        $region37: #{tpu_custom_call.1} parent=27 // pred_check
          %p241 = pneg %p113
        $region38: #{tpu_custom_call.1} parent=27 // pred_check_branch
          %243 = sbr.rel (%p241) target = $region40
        $region39: #{tpu_custom_call.1} parent=27 // pred_region
          %s245 = ssub.s32 16, 16
          %246 = vsyncadd %s238, %s245
          %s247 = sadd.s32 %s22, %s21
          %s248 = smul.addr %s247, 16
          %s249 = scalar_lea.hbm %s2, %s248
          %s251 = sshll.u32 %s240, 4
          %s252 = int_to_ptr.vmem [resolvable:$true] %s251
          %254 = dma.vmem_to_hbm [thread:$0]  %s252, 16, %s249, %s238
        $region40: #{tpu_custom_call.1} parent=27 // pred_fallthru
          _
      $region28: #{tpu_custom_call.1} parent=5 // pred_fallthru
        _
      %p255 = scmp.le.s32.totalorder 2, %s11
      // Predicated region
      $region41: #{tpu_custom_call.1} parent=5 // pred_check
        %p256 = pneg %p255
      $region42: #{tpu_custom_call.1} parent=5 // pred_check_branch
        %258 = sbr.rel (%p256) target = $region44
      $region43: #{tpu_custom_call.1} parent=5 // pred_region
        %s259 = ssub.s32 %s11, 2
        // Predicated region
        $region45: #{tpu_custom_call.1} parent=43 // pred_check
          %p260 = pneg %p119
        $region46: #{tpu_custom_call.1} parent=43 // pred_check_branch
          %262 = sbr.rel (%p260) target = $region48
        $region47: #{tpu_custom_call.1} parent=43 // pred_region
          %s263 = sand.u32 %s104, 1
          %s264 = scalar_lea.sflag [#allocation4], %s263
          %s265 = sand.u32 %s104, 1
          %s266 = scalar_lea.vmem [#allocation3], %s265
          %267 = dma.done %s264, 16
        $region48: #{tpu_custom_call.1} parent=43 // pred_fallthru
          _
      $region44: #{tpu_custom_call.1} parent=5 // pred_fallthru
        _
    $region6: #{tpu_custom_call.1} parent=1 // loop_footer
      %s15 = sadd.s32 1, %s11
    $region7: #{tpu_custom_call.1} parent=1 // loop_footer_branch
      %10 = sbr.rel target = $region3
    $region8: #{tpu_custom_call.1} parent=1 // loop_exit
      _
    %268 = vsyncpa [#allocation4], 1
    %s269 = scalar_lea.sflag [#allocation4], 1
    %270 = vsyncpa %s269, 1

</llo_original>
